<compile_context>
chip_gen: v7x
topology: tpu7x:2x2x1
jax: 0.10.0
libtpu: 0.0.40
codegen_flags: <defaults>
</compile_context>

<pallas_src>
import math
import functools

import jax
import jax.numpy as jnp
from jax import lax
from jax.experimental import pallas as pl
from jax.experimental.pallas import tpu as pltpu


def _round_up(a, m):
    return (a + m - 1) // m * m


def _cdiv(a, b):
    return (a + b - 1) // b


def _vmem_capacity_bytes():
    try:
        info = pltpu.get_tpu_info()
        return int(getattr(info, "vmem_capacity_bytes", 64 * 1024 * 1024))
    except Exception:
        return 64 * 1024 * 1024


def _gelu_exact(x):
    # Matches the torch erf-based gelu in the module: x * 0.5 * (1 + erf(x/sqrt(2)))
    return x * 0.5 * (1.0 + lax.erf(x / math.sqrt(2.0)))


def ffn_kernel(x_ref, w1_ref, b1_ref, w2_ref, b2_ref, lw_ref, lb_ref,
               out_ref, *, eps, matmul_dtype):
    """One row tile: dense(D->Hd) -> erf GELU -> dense(Hd->D) -> +residual -> LayerNorm(D)."""
    x = x_ref[...]                                            # (tm, D) f32 (residual)

    # Dense 1: (tm, D) @ (D, Hd) on the MXU; bf16 inputs, f32 accumulation.
    h = jnp.dot(x.astype(matmul_dtype), w1_ref[...],
                preferred_element_type=jnp.float32) + b1_ref[...]
    h = _gelu_exact(h)                                        # (tm, Hd) f32

    # Dense 2: (tm, Hd) @ (Hd, D)
    y = jnp.dot(h.astype(matmul_dtype), w2_ref[...],
                preferred_element_type=jnp.float32) + b2_ref[...]

    # Dropout is identity at inference.  Residual add, then LayerNorm over D
    # (biased variance, eps inside sqrt -- matches torch.nn.LayerNorm), all f32.
    y = y + x
    mu = jnp.mean(y, axis=-1, keepdims=True)
    d = y - mu
    var = jnp.mean(d * d, axis=-1, keepdims=True)
    yn = d * lax.rsqrt(var + eps)
    out_ref[...] = (lw_ref[...] * yn + lb_ref[...]).astype(out_ref.dtype)


def positionwise_ffn(x, params, *, block_rows=None, eps=1e-5,
                     matmul_dtype=jnp.bfloat16):
    """x: [B, S, d_in] float32. Returns [B, S, d_in] float32."""
    B, S, D = x.shape
    Hd = params["w1"].shape[0]
    assert params["w1"].shape == (Hd, D)
    assert params["w2"].shape == (D, Hd)
    N = B * S

    vmem_phys = _vmem_capacity_bytes()
    if block_rows is None:
        # v5e/v6e (128 MiB VMEM) -> 512 rows; v7x (64 MiB) -> 256 rows.
        block_rows = 512 if vmem_phys >= 96 * 1024 * 1024 else 256

    # Padding-aware tile choice: fix the number of row tiles first, then take the
    # smallest 8-aligned tile covering them, so padded garbage rows stay minimal.
    num_tiles = max(1, _cdiv(N, block_rows))
    if num_tiles == 1 and N > 8:
        num_tiles = 2          # >= 2 grid steps so both v7x TensorCores get work
    tm = _round_up(_cdiv(N, num_tiles), 8)
    N_pad = num_tiles * tm

    x2d = x.reshape(N, D).astype(jnp.float32)
    if N_pad != N:
        x2d = jnp.pad(x2d, ((0, N_pad - N), (0, 0)))

    # One-time canonical [K, N] weight layout + bf16 cast for the MXU.
    w1t = params["w1"].T.astype(matmul_dtype)                  # (D, Hd)
    w2t = params["w2"].T.astype(matmul_dtype)                  # (Hd, D)
    b1 = params["b1"].reshape(1, Hd).astype(jnp.float32)
    b2 = params["b2"].reshape(1, D).astype(jnp.float32)
    lw = params["ln_w"].reshape(1, D).astype(jnp.float32)
    lb = params["ln_b"].reshape(1, D).astype(jnp.float32)

    kernel = functools.partial(ffn_kernel, eps=eps, matmul_dtype=matmul_dtype)

    wbytes = jnp.dtype(matmul_dtype).itemsize
    # VMEM footprint: resident weights (single-buffered) + biases/LN + double-
    # buffered x and out tiles + f32 (tm, Hd) intermediate (with headroom).
    est = (2 * D * Hd * wbytes
           + (Hd + 3 * D) * 4
           + 2 * tm * D * 4            # x tiles (double buffered)
           + 2 * tm * D * 4            # out tiles (double buffered)
           + 2 * tm * Hd * 4)          # hidden intermediate + scratch headroom
    vmem_limit = min(int(vmem_phys * 3 // 4), max(2 * est, 32 * 1024 * 1024))

    cost = pl.CostEstimate(
        flops=4 * N_pad * D * Hd,               # two (tm,D)x(D,Hd)-class matmuls
        transcendentals=N_pad * Hd,             # erf in gelu
        bytes_accessed=(2 * N_pad * D * 4       # x in + out (f32)
                        + 2 * D * Hd * wbytes   # bf16 weights, read once
                        + (Hd + 3 * D) * 4),
    )

    def _call(weights_single_buffered):
        # Grid-invariant operands: constant index_map -> single buffer is enough.
        wkw = ({"pipeline_mode": pl.Buffered(1)} if weights_single_buffered else {})
        in_specs = [
            pl.BlockSpec((tm, D), lambda i: (i, 0)),           # x rows (streamed)
            pl.BlockSpec((D, Hd), lambda i: (0, 0), **wkw),    # W1^T (resident)
            pl.BlockSpec((1, Hd), lambda i: (0, 0), **wkw),    # b1
            pl.BlockSpec((Hd, D), lambda i: (0, 0), **wkw),    # W2^T (resident)
            pl.BlockSpec((1, D), lambda i: (0, 0), **wkw),     # b2
            pl.BlockSpec((1, D), lambda i: (0, 0), **wkw),     # LN weight
            pl.BlockSpec((1, D), lambda i: (0, 0), **wkw),     # LN bias
        ]
        # NOTE: output is lane-dense (unmasked vst) only when D >= 128; for small
        # d_in like the toy config below the store is a masked partial store.
        out_specs = pl.BlockSpec((tm, D), lambda i: (i, 0))
        return pl.pallas_call(
            kernel,
            out_shape=jax.ShapeDtypeStruct((N_pad, D), x.dtype),
            grid_spec=pltpu.PrefetchScalarGridSpec(
                num_scalar_prefetch=0,
                grid=(num_tiles,),
                in_specs=in_specs,
                out_specs=out_specs,
            ),
            compiler_params=pltpu.CompilerParams(
                dimension_semantics=("parallel",),
                vmem_limit_bytes=vmem_limit,
            ),
            cost_estimate=cost,
        )(x2d, w1t, b1, w2t, b2, lw, lb)

    try:
        out2d = _call(True)
    except Exception:
        # pipeline_mode=pl.Buffered(1) not supported on this jax version; the
        # default double-buffered (but still grid-invariant) specs are correct.
        out2d = _call(False)

    return out2d[:N].reshape(B, S, D)


def reference(x, params, eps=1e-5):
    """Pure-JAX f32 reference matching the PyTorch module in eval mode."""
    h = jnp.einsum("bsd,hd->bsh", x, params["w1"]) + params["b1"]
    h = h * 0.5 * (1.0 + lax.erf(h / math.sqrt(2.0)))
    y = jnp.einsum("bsh,dh->bsd", h, params["w2"]) + params["b2"]
    y = y + x                                   # dropout == identity at inference
    mu = y.mean(-1, keepdims=True)
    var = ((y - mu) ** 2).mean(-1, keepdims=True)
    yn = (y - mu) / jnp.sqrt(var + eps)
    return params["ln_w"] * yn + params["ln_b"]


if __name__ == "__main__":
    # Small config: batch=2, seq=8, d_in=32, d_hid=128
    B, S, D, Hd = 2, 8, 32, 128

    key = jax.random.PRNGKey(0)
    k_x, k_w1, k_b1, k_w2, k_b2, k_lw, k_lb = jax.random.split(key, 7)

    x = jax.random.normal(k_x, (B, S, D), dtype=jnp.float32)

    params = {
        # Conv1d(d_in, d_hid, 1).weight squeezed -> [d_hid, d_in], bias [d_hid]
        "w1": jax.random.normal(k_w1, (Hd, D), dtype=jnp.float32) * 0.05,
        "b1": jax.random.normal(k_b1, (Hd,), dtype=jnp.float32) * 0.05,
        # Conv1d(d_hid, d_in, 1).weight squeezed -> [d_in, d_hid], bias [d_in]
        "w2": jax.random.normal(k_w2, (D, Hd), dtype=jnp.float32) * 0.05,
        "b2": jax.random.normal(k_b2, (D,), dtype=jnp.float32) * 0.05,
        # nn.LayerNorm(d_in): affine params (randomized to exercise the math)
        "ln_w": 1.0 + 0.1 * jax.random.normal(k_lw, (D,), dtype=jnp.float32),
        "ln_b": 0.1 * jax.random.normal(k_lb, (D,), dtype=jnp.float32),
    }

    # TODO(synk): training-mode Dropout (stochastic masking) is not implemented;
    # the kernel realizes the inference-mode (identity) forward pass.

    out = positionwise_ffn(x, params)
    out = jax.block_until_ready(out)

    ref = reference(x, params)
    assert out.shape == (B, S, D)
    # bf16 matmul inputs (f32 accumulation) -> compare to the f32 reference with
    # a correspondingly looser tolerance.
    assert jnp.allclose(out, ref, atol=2e-2, rtol=2e-2), \
        f"max err {jnp.max(jnp.abs(out - ref))}"

    print("KERNEL_OK")
</pallas_src>

<mosaic_0001>
module attributes {stable_mosaic.version = 11 : i64} {
  func.func @ffn_kernel(%arg0: i32, %arg1: memref<8x32xf32, #tpu.memory_space<vmem>>, %arg2: memref<32x128xbf16, #tpu.memory_space<vmem>>, %arg3: memref<1x128xf32, #tpu.memory_space<vmem>>, %arg4: memref<128x32xbf16, #tpu.memory_space<vmem>>, %arg5: memref<1x32xf32, #tpu.memory_space<vmem>>, %arg6: memref<1x32xf32, #tpu.memory_space<vmem>>, %arg7: memref<1x32xf32, #tpu.memory_space<vmem>>, %arg8: memref<8x32xf32, #tpu.memory_space<vmem>>) attributes {dimension_semantics = [#tpu.dimension_semantics<parallel>], iteration_bounds = array<i64: 2>, scalar_prefetch = 0 : i64, scratch_operands = 0 : i64, tpu.core_type = #tpu.core_type<tc>, window_params = [{transform_indices = @transform_0, window_bounds = array<i64: 8, 32>}, {pipeline_mode = #tpu.pipeline_mode<synchronous>, transform_indices = @transform_1, window_bounds = array<i64: 32, 128>}, {pipeline_mode = #tpu.pipeline_mode<synchronous>, transform_indices = @transform_2, window_bounds = array<i64: 1, 128>}, {pipeline_mode = #tpu.pipeline_mode<synchronous>, transform_indices = @transform_3, window_bounds = array<i64: 128, 32>}, {pipeline_mode = #tpu.pipeline_mode<synchronous>, transform_indices = @transform_4, window_bounds = array<i64: 1, 32>}, {pipeline_mode = #tpu.pipeline_mode<synchronous>, transform_indices = @transform_5, window_bounds = array<i64: 1, 32>}, {pipeline_mode = #tpu.pipeline_mode<synchronous>, transform_indices = @transform_6, window_bounds = array<i64: 1, 32>}, {transform_indices = @transform_7, window_bounds = array<i64: 8, 32>}]} {
    %c0 = arith.constant 0 : index
    %c0_0 = arith.constant 0 : index
    %0 = vector.load %arg1[%c0, %c0_0] : memref<8x32xf32, #tpu.memory_space<vmem>>, vector<8x32xf32>
    %1 = arith.truncf %0 : vector<8x32xf32> to vector<8x32xbf16>
    %c0_1 = arith.constant 0 : index
    %c0_2 = arith.constant 0 : index
    %2 = vector.load %arg2[%c0_1, %c0_2] : memref<32x128xbf16, #tpu.memory_space<vmem>>, vector<32x128xbf16>
    %cst = arith.constant dense<0.000000e+00> : vector<8x128xf32>
    %3 = tpu.matmul %1, %2, %cst {dimension_numbers = #tpu.dot_dimension_numbers<[1], [0], [0], [1], [0, 0, 1, 1], [], []>} : vector<8x32xbf16>, vector<32x128xbf16>, vector<8x128xf32> -> vector<8x128xf32>
    %c0_3 = arith.constant 0 : index
    %c0_4 = arith.constant 0 : index
    %4 = vector.load %arg3[%c0_3, %c0_4] : memref<1x128xf32, #tpu.memory_space<vmem>>, vector<1x128xf32>
    %5 = vector.broadcast %4 : vector<1x128xf32> to vector<8x128xf32>
    %6 = arith.addf %3, %5 : vector<8x128xf32>
    %cst_5 = arith.constant 5.000000e-01 : f32
    %7 = vector.broadcast %cst_5 : f32 to vector<8x128xf32>
    %8 = arith.mulf %6, %7 : vector<8x128xf32>
    %cst_6 = arith.constant 1.41421354 : f32
    %9 = vector.broadcast %cst_6 : f32 to vector<8x128xf32>
    %10 = arith.divf %6, %9 : vector<8x128xf32>
    %11 = math.erf %10 : vector<8x128xf32>
    %cst_7 = arith.constant 1.000000e+00 : f32
    %12 = vector.broadcast %cst_7 : f32 to vector<8x128xf32>
    %13 = arith.addf %12, %11 : vector<8x128xf32>
    %14 = arith.mulf %8, %13 : vector<8x128xf32>
    %15 = arith.truncf %14 : vector<8x128xf32> to vector<8x128xbf16>
    %c0_8 = arith.constant 0 : index
    %c0_9 = arith.constant 0 : index
    %16 = vector.load %arg4[%c0_8, %c0_9] : memref<128x32xbf16, #tpu.memory_space<vmem>>, vector<128x32xbf16>
    %cst_10 = arith.constant dense<0.000000e+00> : vector<8x32xf32>
    %17 = tpu.matmul %15, %16, %cst_10 {dimension_numbers = #tpu.dot_dimension_numbers<[1], [0], [0], [1], [0, 0, 1, 1], [], []>} : vector<8x128xbf16>, vector<128x32xbf16>, vector<8x32xf32> -> vector<8x32xf32>
    %c0_11 = arith.constant 0 : index
    %c0_12 = arith.constant 0 : index
    %18 = vector.load %arg5[%c0_11, %c0_12] : memref<1x32xf32, #tpu.memory_space<vmem>>, vector<1x32xf32>
    %19 = vector.broadcast %18 : vector<1x32xf32> to vector<8x32xf32>
    %20 = arith.addf %17, %19 : vector<8x32xf32>
    %21 = arith.addf %20, %0 : vector<8x32xf32>
    %cst_13 = arith.constant dense<0.000000e+00> : vector<8xf32>
    %22 = vector.multi_reduction <add>, %21, %cst_13 [1] : vector<8x32xf32> to vector<8xf32>
    %23 = vector.shape_cast %22 : vector<8xf32> to vector<8x1xf32>
    %cst_14 = arith.constant 3.200000e+01 : f32
    %24 = vector.broadcast %cst_14 : f32 to vector<8x1xf32>
    %25 = arith.divf %23, %24 : vector<8x1xf32>
    %26 = vector.broadcast %25 : vector<8x1xf32> to vector<8x32xf32>
    %27 = arith.subf %21, %26 : vector<8x32xf32>
    %28 = arith.mulf %27, %27 : vector<8x32xf32>
    %cst_15 = arith.constant dense<0.000000e+00> : vector<8xf32>
    %29 = vector.multi_reduction <add>, %28, %cst_15 [1] : vector<8x32xf32> to vector<8xf32>
    %30 = vector.shape_cast %29 : vector<8xf32> to vector<8x1xf32>
    %cst_16 = arith.constant 3.200000e+01 : f32
    %31 = vector.broadcast %cst_16 : f32 to vector<8x1xf32>
    %32 = arith.divf %30, %31 : vector<8x1xf32>
    %cst_17 = arith.constant 9.99999974E-6 : f32
    %33 = vector.broadcast %cst_17 : f32 to vector<8x1xf32>
    %34 = arith.addf %32, %33 : vector<8x1xf32>
    %35 = math.rsqrt %34 : vector<8x1xf32>
    %36 = vector.broadcast %35 : vector<8x1xf32> to vector<8x32xf32>
    %37 = arith.mulf %27, %36 : vector<8x32xf32>
    %c0_18 = arith.constant 0 : index
    %c0_19 = arith.constant 0 : index
    %38 = vector.load %arg6[%c0_18, %c0_19] : memref<1x32xf32, #tpu.memory_space<vmem>>, vector<1x32xf32>
    %39 = vector.broadcast %38 : vector<1x32xf32> to vector<8x32xf32>
    %40 = arith.mulf %39, %37 : vector<8x32xf32>
    %c0_20 = arith.constant 0 : index
    %c0_21 = arith.constant 0 : index
    %41 = vector.load %arg7[%c0_20, %c0_21] : memref<1x32xf32, #tpu.memory_space<vmem>>, vector<1x32xf32>
    %42 = vector.broadcast %41 : vector<1x32xf32> to vector<8x32xf32>
    %43 = arith.addf %40, %42 : vector<8x32xf32>
    %c0_22 = arith.constant 0 : index
    %c0_23 = arith.constant 0 : index
    %44 = vector.load %arg8[%c0_22, %c0_23] : memref<8x32xf32, #tpu.memory_space<vmem>>, vector<8x32xf32>
    tpu.vector_store %arg8[%c0_22, %c0_23], %43 {strides = array<i32>} : memref<8x32xf32, #tpu.memory_space<vmem>>, vector<8x32xf32>,
    return
  }
  func.func @transform_0(%arg0: i32) -> (i32, i32) {
    %c0_i32 = arith.constant 0 : i32
    %c0_i32_0 = arith.constant 0 : i32
    return %arg0, %c0_i32 : i32, i32
  }
  func.func @transform_1(%arg0: i32) -> (i32, i32) {
    %c0_i32 = arith.constant 0 : i32
    %c0_i32_0 = arith.constant 0 : i32
    %c0_i32_1 = arith.constant 0 : i32
    return %c0_i32, %c0_i32_0 : i32, i32
  }
  func.func @transform_2(%arg0: i32) -> (i32, i32) {
    %c0_i32 = arith.constant 0 : i32
    %c0_i32_0 = arith.constant 0 : i32
    %c0_i32_1 = arith.constant 0 : i32
    return %c0_i32, %c0_i32_0 : i32, i32
  }
  func.func @transform_3(%arg0: i32) -> (i32, i32) {
    %c0_i32 = arith.constant 0 : i32
    %c0_i32_0 = arith.constant 0 : i32
    %c0_i32_1 = arith.constant 0 : i32
    return %c0_i32, %c0_i32_0 : i32, i32
  }
  func.func @transform_4(%arg0: i32) -> (i32, i32) {
    %c0_i32 = arith.constant 0 : i32
    %c0_i32_0 = arith.constant 0 : i32
    %c0_i32_1 = arith.constant 0 : i32
    return %c0_i32, %c0_i32_0 : i32, i32
  }
  func.func @transform_5(%arg0: i32) -> (i32, i32) {
    %c0_i32 = arith.constant 0 : i32
    %c0_i32_0 = arith.constant 0 : i32
    %c0_i32_1 = arith.constant 0 : i32
    return %c0_i32, %c0_i32_0 : i32, i32
  }
  func.func @transform_6(%arg0: i32) -> (i32, i32) {
    %c0_i32 = arith.constant 0 : i32
    %c0_i32_0 = arith.constant 0 : i32
    %c0_i32_1 = arith.constant 0 : i32
    return %c0_i32, %c0_i32_0 : i32, i32
  }
  func.func @transform_7(%arg0: i32) -> (i32, i32) {
    %c0_i32 = arith.constant 0 : i32
    %c0_i32_0 = arith.constant 0 : i32
    return %arg0, %c0_i32 : i32, i32
  }
}

module attributes {stable_mosaic.version = 11 : i64} {
  func.func @ffn_kernel(%arg0: i32, %arg1: memref<8x32xf32, #tpu.memory_space<vmem>>, %arg2: memref<32x128xbf16, #tpu.memory_space<vmem>>, %arg3: memref<1x128xf32, #tpu.memory_space<vmem>>, %arg4: memref<128x32xbf16, #tpu.memory_space<vmem>>, %arg5: memref<1x32xf32, #tpu.memory_space<vmem>>, %arg6: memref<1x32xf32, #tpu.memory_space<vmem>>, %arg7: memref<1x32xf32, #tpu.memory_space<vmem>>, %arg8: memref<8x32xf32, #tpu.memory_space<vmem>>) attributes {dimension_semantics = [#tpu.dimension_semantics<parallel>], iteration_bounds = array<i64: 2>, scalar_prefetch = 0 : i64, scratch_operands = 0 : i64, tpu.core_type = #tpu.core_type<tc>, window_params = [{transform_indices = @transform_0, window_bounds = array<i64: 8, 32>}, {pipeline_mode = #tpu.pipeline_mode<synchronous>, transform_indices = @transform_1, window_bounds = array<i64: 32, 128>}, {pipeline_mode = #tpu.pipeline_mode<synchronous>, transform_indices = @transform_2, window_bounds = array<i64: 1, 128>}, {pipeline_mode = #tpu.pipeline_mode<synchronous>, transform_indices = @transform_3, window_bounds = array<i64: 128, 32>}, {pipeline_mode = #tpu.pipeline_mode<synchronous>, transform_indices = @transform_4, window_bounds = array<i64: 1, 32>}, {pipeline_mode = #tpu.pipeline_mode<synchronous>, transform_indices = @transform_5, window_bounds = array<i64: 1, 32>}, {pipeline_mode = #tpu.pipeline_mode<synchronous>, transform_indices = @transform_6, window_bounds = array<i64: 1, 32>}, {transform_indices = @transform_7, window_bounds = array<i64: 8, 32>}]} {
    %c0 = arith.constant 0 : index
    %c0_0 = arith.constant 0 : index
    %0 = vector.load %arg1[%c0, %c0_0] : memref<8x32xf32, #tpu.memory_space<vmem>>, vector<8x32xf32>
    %1 = arith.truncf %0 : vector<8x32xf32> to vector<8x32xbf16>
    %c0_1 = arith.constant 0 : index
    %c0_2 = arith.constant 0 : index
    %2 = vector.load %arg2[%c0_1, %c0_2] : memref<32x128xbf16, #tpu.memory_space<vmem>>, vector<32x128xbf16>
    %cst = arith.constant dense<0.000000e+00> : vector<8x128xf32>
    %3 = tpu.matmul %1, %2, %cst {dimension_numbers = #tpu.dot_dimension_numbers<[1], [0], [0], [1], [0, 0, 1, 1], [], []>} : vector<8x32xbf16>, vector<32x128xbf16>, vector<8x128xf32> -> vector<8x128xf32>
    %c0_3 = arith.constant 0 : index
    %c0_4 = arith.constant 0 : index
    %4 = vector.load %arg3[%c0_3, %c0_4] : memref<1x128xf32, #tpu.memory_space<vmem>>, vector<1x128xf32>
    %5 = vector.broadcast %4 : vector<1x128xf32> to vector<8x128xf32>
    %6 = arith.addf %3, %5 : vector<8x128xf32>
    %cst_5 = arith.constant 5.000000e-01 : f32
    %7 = vector.broadcast %cst_5 : f32 to vector<8x128xf32>
    %8 = arith.mulf %6, %7 : vector<8x128xf32>
    %cst_6 = arith.constant 1.41421354 : f32
    %9 = vector.broadcast %cst_6 : f32 to vector<8x128xf32>
    %10 = arith.divf %6, %9 : vector<8x128xf32>
    %11 = math.erf %10 : vector<8x128xf32>
    %cst_7 = arith.constant 1.000000e+00 : f32
    %12 = vector.broadcast %cst_7 : f32 to vector<8x128xf32>
    %13 = arith.addf %12, %11 : vector<8x128xf32>
    %14 = arith.mulf %8, %13 : vector<8x128xf32>
    %15 = arith.truncf %14 : vector<8x128xf32> to vector<8x128xbf16>
    %c0_8 = arith.constant 0 : index
    %c0_9 = arith.constant 0 : index
    %16 = vector.load %arg4[%c0_8, %c0_9] : memref<128x32xbf16, #tpu.memory_space<vmem>>, vector<128x32xbf16>
    %cst_10 = arith.constant dense<0.000000e+00> : vector<8x32xf32>
    %17 = tpu.matmul %15, %16, %cst_10 {dimension_numbers = #tpu.dot_dimension_numbers<[1], [0], [0], [1], [0, 0, 1, 1], [], []>} : vector<8x128xbf16>, vector<128x32xbf16>, vector<8x32xf32> -> vector<8x32xf32>
    %c0_11 = arith.constant 0 : index
    %c0_12 = arith.constant 0 : index
    %18 = vector.load %arg5[%c0_11, %c0_12] : memref<1x32xf32, #tpu.memory_space<vmem>>, vector<1x32xf32>
    %19 = vector.broadcast %18 : vector<1x32xf32> to vector<8x32xf32>
    %20 = arith.addf %17, %19 : vector<8x32xf32>
    %21 = arith.addf %20, %0 : vector<8x32xf32>
    %cst_13 = arith.constant dense<0.000000e+00> : vector<8xf32>
    %22 = vector.multi_reduction <add>, %21, %cst_13 [1] : vector<8x32xf32> to vector<8xf32>
    %23 = vector.shape_cast %22 : vector<8xf32> to vector<8x1xf32>
    %cst_14 = arith.constant 3.200000e+01 : f32
    %24 = vector.broadcast %cst_14 : f32 to vector<8x1xf32>
    %25 = arith.divf %23, %24 : vector<8x1xf32>
    %26 = vector.broadcast %25 : vector<8x1xf32> to vector<8x32xf32>
    %27 = arith.subf %21, %26 : vector<8x32xf32>
    %28 = arith.mulf %27, %27 : vector<8x32xf32>
    %cst_15 = arith.constant dense<0.000000e+00> : vector<8xf32>
    %29 = vector.multi_reduction <add>, %28, %cst_15 [1] : vector<8x32xf32> to vector<8xf32>
    %30 = vector.shape_cast %29 : vector<8xf32> to vector<8x1xf32>
    %cst_16 = arith.constant 3.200000e+01 : f32
    %31 = vector.broadcast %cst_16 : f32 to vector<8x1xf32>
    %32 = arith.divf %30, %31 : vector<8x1xf32>
    %cst_17 = arith.constant 9.99999974E-6 : f32
    %33 = vector.broadcast %cst_17 : f32 to vector<8x1xf32>
    %34 = arith.addf %32, %33 : vector<8x1xf32>
    %35 = math.rsqrt %34 : vector<8x1xf32>
    %36 = vector.broadcast %35 : vector<8x1xf32> to vector<8x32xf32>
    %37 = arith.mulf %27, %36 : vector<8x32xf32>
    %c0_18 = arith.constant 0 : index
    %c0_19 = arith.constant 0 : index
    %38 = vector.load %arg6[%c0_18, %c0_19] : memref<1x32xf32, #tpu.memory_space<vmem>>, vector<1x32xf32>
    %39 = vector.broadcast %38 : vector<1x32xf32> to vector<8x32xf32>
    %40 = arith.mulf %39, %37 : vector<8x32xf32>
    %c0_20 = arith.constant 0 : index
    %c0_21 = arith.constant 0 : index
    %41 = vector.load %arg7[%c0_20, %c0_21] : memref<1x32xf32, #tpu.memory_space<vmem>>, vector<1x32xf32>
    %42 = vector.broadcast %41 : vector<1x32xf32> to vector<8x32xf32>
    %43 = arith.addf %40, %42 : vector<8x32xf32>
    %c0_22 = arith.constant 0 : index
    %c0_23 = arith.constant 0 : index
    %44 = vector.load %arg8[%c0_22, %c0_23] : memref<8x32xf32, #tpu.memory_space<vmem>>, vector<8x32xf32>
    tpu.vector_store %arg8[%c0_22, %c0_23], %43 {strides = array<i32>} : memref<8x32xf32, #tpu.memory_space<vmem>>, vector<8x32xf32>,
    return
  }
  func.func @transform_0(%arg0: i32) -> (i32, i32) {
    %c0_i32 = arith.constant 0 : i32
    %c0_i32_0 = arith.constant 0 : i32
    return %arg0, %c0_i32 : i32, i32
  }
  func.func @transform_1(%arg0: i32) -> (i32, i32) {
    %c0_i32 = arith.constant 0 : i32
    %c0_i32_0 = arith.constant 0 : i32
    %c0_i32_1 = arith.constant 0 : i32
    return %c0_i32, %c0_i32_0 : i32, i32
  }
  func.func @transform_2(%arg0: i32) -> (i32, i32) {
    %c0_i32 = arith.constant 0 : i32
    %c0_i32_0 = arith.constant 0 : i32
    %c0_i32_1 = arith.constant 0 : i32
    return %c0_i32, %c0_i32_0 : i32, i32
  }
  func.func @transform_3(%arg0: i32) -> (i32, i32) {
    %c0_i32 = arith.constant 0 : i32
    %c0_i32_0 = arith.constant 0 : i32
    %c0_i32_1 = arith.constant 0 : i32
    return %c0_i32, %c0_i32_0 : i32, i32
  }
  func.func @transform_4(%arg0: i32) -> (i32, i32) {
    %c0_i32 = arith.constant 0 : i32
    %c0_i32_0 = arith.constant 0 : i32
    %c0_i32_1 = arith.constant 0 : i32
    return %c0_i32, %c0_i32_0 : i32, i32
  }
  func.func @transform_5(%arg0: i32) -> (i32, i32) {
    %c0_i32 = arith.constant 0 : i32
    %c0_i32_0 = arith.constant 0 : i32
    %c0_i32_1 = arith.constant 0 : i32
    return %c0_i32, %c0_i32_0 : i32, i32
  }
  func.func @transform_6(%arg0: i32) -> (i32, i32) {
    %c0_i32 = arith.constant 0 : i32
    %c0_i32_0 = arith.constant 0 : i32
    %c0_i32_1 = arith.constant 0 : i32
    return %c0_i32, %c0_i32_0 : i32, i32
  }
  func.func @transform_7(%arg0: i32) -> (i32, i32) {
    %c0_i32 = arith.constant 0 : i32
    %c0_i32_0 = arith.constant 0 : i32
    return %arg0, %c0_i32 : i32, i32
  }
}

</mosaic_0001>

<llo_original>
// kernel: tpu_custom_call.1
$region0: #{tpu_custom_call.1}
  #allocation0 [shape = 'u32[]', space=smem, size = 0x4, offset = 0x4, fixed_abs, tag = 'smem constant byte address 0x4 - core index']
  #allocation1 [shape = 'u32[144,128]{1,0:T(1,128)}', space=vmem, size = 0x12000, scoped, tag = 'internal scratch']
  %s0 = inlined_call_operand.vmem [shape: f32[16,32], index: 0, kind: input, shape index: {}]
  %s1 = inlined_call_operand.vmem [shape: bf16[32,128], index: 1, kind: input, shape index: {}]
  %s2 = inlined_call_operand.vmem [shape: f32[1,128], index: 2, kind: input, shape index: {}]
  %s3 = inlined_call_operand.vmem [shape: bf16[128,32], index: 3, kind: input, shape index: {}]
  %s4 = inlined_call_operand.vmem [shape: f32[1,32], index: 4, kind: input, shape index: {}]
  %s5 = inlined_call_operand.vmem [shape: f32[1,32], index: 5, kind: input, shape index: {}]
  %s6 = inlined_call_operand.vmem [shape: f32[1,32], index: 6, kind: input, shape index: {}]
  %s7 = inlined_call_operand.hbm [shape: f32[16,32], index: 7, kind: output, shape index: {}]
  %s8 = sld [smem:[#allocation0]]
  $region61: #{tpu_custom_call.1} parent=0
    _
  %s10 = ssub.s32 1, %s8
  %s11 = scalar_select 0, %s10, %s8
  $region1: #{tpu_custom_call.1} parent=0
    #allocation2 [shape = 'u8[8192]{0}', space=vmem, size = 0x2000, scoped, tag = 'output window, operand 0']
    #allocation3 [shape = 's32[2]{0}', space=sflag, size = 0x8, scoped, tag = 'scoped memory for tpu_custom_call.1']
    %12 = vsyncpa [#allocation3], 0
    %s13 = scalar_lea.sflag [#allocation3], 1
    %14 = vsyncpa %s13, 0
    loop: start=0, step=1, limit=4
    $region2: #{tpu_custom_call.1} parent=1 // loop_pre_header
      _
    $region3: #{tpu_custom_call.1} parent=1 // loop_header
      %s16 = sphi 0, %s20
      %p17 = scmp.ge.s32.totalorder %s16, 4
      %s26 = sphi 0, %s28
      %s29 = sphi 0, %s26
      %s30 = sphi 0, %s29
      %s46 = sphi 0, %s30
      %s50 = sphi 0, %s50
      %s52 = sphi 0, %s50
      %s53 = sphi 0, %s52
      %s67 = sphi 0, %s53
      %s71 = sphi 0, %s71
      %s73 = sphi 0, %s71
      %s74 = sphi 0, %s73
      %s88 = sphi 0, %s74
      %s92 = sphi 0, %s92
      %s94 = sphi 0, %s92
      %s95 = sphi 0, %s94
      %s109 = sphi 0, %s95
      %s113 = sphi 0, %s113
      %s115 = sphi 0, %s113
      %s116 = sphi 0, %s115
      %s130 = sphi 0, %s116
      %s134 = sphi 0, %s134
      %s136 = sphi 0, %s134
      %s137 = sphi 0, %s136
      %s151 = sphi 0, %s137
      %s155 = sphi 0, %s155
      %s157 = sphi 0, %s155
      %s158 = sphi 0, %s157
      %s172 = sphi 0, %s158
      %s178 = sphi 0, %s180
      %s181 = sphi 0, %s178
      %s182 = sphi 0, %s181
      %s198 = sphi 0, %s182
    $region4: #{tpu_custom_call.1} parent=1 // loop_header_branch
      %19 = sbr.rel (%p17) target = $region8
    $region5: #{tpu_custom_call.1} parent=1 // loop_body
      %s21 = ssub.s32 %s16, 1
      %s22 = ssub.s32 %s16, 2
      %s23 = sadd.s32 %s16, 1
      %s24 = ssub.s32 %s16, %s23
      %p25 = scmp.eq.s32.totalorder %s24, 0
      %s27 = sadd.s32 %s26, 1
      %s28 = scalar_select %p25, %s26, %s27
      %p31 = pneg %p25
      %p32 = scmp.eq.s32.totalorder %s16, 1
      %p33 = por %p31, %p32
      %p34 = scmp.ne.s32.totalorder %s26, %s29
      %p35 = scmp.eq.s32.totalorder %s16, 0
      %p36 = por %p34, %p35
      %p37 = scmp.ne.s32.totalorder %s26, %s29
      %p38 = scmp.eq.s32.totalorder %s21, 1
      %p39 = por %p37, %p38
      %p40 = scmp.ne.s32.totalorder %s29, %s30
      %p41 = scmp.eq.s32.totalorder %s21, 0
      %p42 = por %p40, %p41
      %p43 = scmp.ne.s32.totalorder %s29, %s30
      %p44 = scmp.eq.s32.totalorder %s22, 1
      %p45 = por %p43, %p44
      %p47 = scmp.ne.s32.totalorder %s30, %s46
      %p48 = scmp.eq.s32.totalorder %s22, 0
      %p49 = por %p47, %p48
      %s51 = sadd.s32 %s50, 1
      %p54 = scmp.eq.s32.totalorder %s16, 1
      %p55 = scmp.ne.s32.totalorder %s50, %s52
      %p56 = scmp.eq.s32.totalorder %s16, 0
      %p57 = por %p55, %p56
      %p58 = scmp.ne.s32.totalorder %s50, %s52
      %p59 = scmp.eq.s32.totalorder %s21, 1
      %p60 = por %p58, %p59
      %p61 = scmp.ne.s32.totalorder %s52, %s53
      %p62 = scmp.eq.s32.totalorder %s21, 0
      %p63 = por %p61, %p62
      %p64 = scmp.ne.s32.totalorder %s52, %s53
      %p65 = scmp.eq.s32.totalorder %s22, 1
      %p66 = por %p64, %p65
      %p68 = scmp.ne.s32.totalorder %s53, %s67
      %p69 = scmp.eq.s32.totalorder %s22, 0
      %p70 = por %p68, %p69
      %s72 = sadd.s32 %s71, 1
      %p75 = scmp.eq.s32.totalorder %s16, 1
      %p76 = scmp.ne.s32.totalorder %s71, %s73
      %p77 = scmp.eq.s32.totalorder %s16, 0
      %p78 = por %p76, %p77
      %p79 = scmp.ne.s32.totalorder %s71, %s73
      %p80 = scmp.eq.s32.totalorder %s21, 1
      %p81 = por %p79, %p80
      %p82 = scmp.ne.s32.totalorder %s73, %s74
      %p83 = scmp.eq.s32.totalorder %s21, 0
      %p84 = por %p82, %p83
      %p85 = scmp.ne.s32.totalorder %s73, %s74
      %p86 = scmp.eq.s32.totalorder %s22, 1
      %p87 = por %p85, %p86
      %p89 = scmp.ne.s32.totalorder %s74, %s88
      %p90 = scmp.eq.s32.totalorder %s22, 0
      %p91 = por %p89, %p90
      %s93 = sadd.s32 %s92, 1
      %p96 = scmp.eq.s32.totalorder %s16, 1
      %p97 = scmp.ne.s32.totalorder %s92, %s94
      %p98 = scmp.eq.s32.totalorder %s16, 0
      %p99 = por %p97, %p98
      %p100 = scmp.ne.s32.totalorder %s92, %s94
      %p101 = scmp.eq.s32.totalorder %s21, 1
      %p102 = por %p100, %p101
      %p103 = scmp.ne.s32.totalorder %s94, %s95
      %p104 = scmp.eq.s32.totalorder %s21, 0
      %p105 = por %p103, %p104
      %p106 = scmp.ne.s32.totalorder %s94, %s95
      %p107 = scmp.eq.s32.totalorder %s22, 1
      %p108 = por %p106, %p107
      %p110 = scmp.ne.s32.totalorder %s95, %s109
      %p111 = scmp.eq.s32.totalorder %s22, 0
      %p112 = por %p110, %p111
      %s114 = sadd.s32 %s113, 1
      %p117 = scmp.eq.s32.totalorder %s16, 1
      %p118 = scmp.ne.s32.totalorder %s113, %s115
      %p119 = scmp.eq.s32.totalorder %s16, 0
      %p120 = por %p118, %p119
      %p121 = scmp.ne.s32.totalorder %s113, %s115
      %p122 = scmp.eq.s32.totalorder %s21, 1
      %p123 = por %p121, %p122
      %p124 = scmp.ne.s32.totalorder %s115, %s116
      %p125 = scmp.eq.s32.totalorder %s21, 0
      %p126 = por %p124, %p125
      %p127 = scmp.ne.s32.totalorder %s115, %s116
      %p128 = scmp.eq.s32.totalorder %s22, 1
      %p129 = por %p127, %p128
      %p131 = scmp.ne.s32.totalorder %s116, %s130
      %p132 = scmp.eq.s32.totalorder %s22, 0
      %p133 = por %p131, %p132
      %s135 = sadd.s32 %s134, 1
      %p138 = scmp.eq.s32.totalorder %s16, 1
      %p139 = scmp.ne.s32.totalorder %s134, %s136
      %p140 = scmp.eq.s32.totalorder %s16, 0
      %p141 = por %p139, %p140
      %p142 = scmp.ne.s32.totalorder %s134, %s136
      %p143 = scmp.eq.s32.totalorder %s21, 1
      %p144 = por %p142, %p143
      %p145 = scmp.ne.s32.totalorder %s136, %s137
      %p146 = scmp.eq.s32.totalorder %s21, 0
      %p147 = por %p145, %p146
      %p148 = scmp.ne.s32.totalorder %s136, %s137
      %p149 = scmp.eq.s32.totalorder %s22, 1
      %p150 = por %p148, %p149
      %p152 = scmp.ne.s32.totalorder %s137, %s151
      %p153 = scmp.eq.s32.totalorder %s22, 0
      %p154 = por %p152, %p153
      %s156 = sadd.s32 %s155, 1
      %p159 = scmp.eq.s32.totalorder %s16, 1
      %p160 = scmp.ne.s32.totalorder %s155, %s157
      %p161 = scmp.eq.s32.totalorder %s16, 0
      %p162 = por %p160, %p161
      %p163 = scmp.ne.s32.totalorder %s155, %s157
      %p164 = scmp.eq.s32.totalorder %s21, 1
      %p165 = por %p163, %p164
      %p166 = scmp.ne.s32.totalorder %s157, %s158
      %p167 = scmp.eq.s32.totalorder %s21, 0
      %p168 = por %p166, %p167
      %p169 = scmp.ne.s32.totalorder %s157, %s158
      %p170 = scmp.eq.s32.totalorder %s22, 1
      %p171 = por %p169, %p170
      %p173 = scmp.ne.s32.totalorder %s158, %s172
      %p174 = scmp.eq.s32.totalorder %s22, 0
      %p175 = por %p173, %p174
      %s176 = ssub.s32 %s16, %s23
      %p177 = scmp.eq.s32.totalorder %s176, 0
      %s179 = sadd.s32 %s178, 1
      %s180 = scalar_select %p177, %s178, %s179
      %p183 = pneg %p177
      %p184 = scmp.eq.s32.totalorder %s16, 1
      %p185 = por %p183, %p184
      %p186 = scmp.ne.s32.totalorder %s178, %s181
      %p187 = scmp.eq.s32.totalorder %s16, 0
      %p188 = por %p186, %p187
      %p189 = scmp.ne.s32.totalorder %s178, %s181
      %p190 = scmp.eq.s32.totalorder %s21, 1
      %p191 = por %p189, %p190
      %p192 = scmp.ne.s32.totalorder %s181, %s182
      %p193 = scmp.eq.s32.totalorder %s21, 0
      %p194 = por %p192, %p193
      %p195 = scmp.ne.s32.totalorder %s181, %s182
      %p196 = scmp.eq.s32.totalorder %s22, 1
      %p197 = por %p195, %p196
      %p199 = scmp.ne.s32.totalorder %s182, %s198
      %p200 = scmp.eq.s32.totalorder %s22, 0
      %p201 = por %p199, %p200
      %p202 = scmp.le.s32.totalorder 1, %s16
      %p203 = scmp.lt.s32.totalorder %s16, 3
      %p204 = pnand %p202, %p203
      %p205 = pneg %p204
      // Predicated region
      $region9: #{tpu_custom_call.1} parent=5 // pred_check
        _
      $region10: #{tpu_custom_call.1} parent=5 // pred_check_branch
        %207 = sbr.rel (%p204) target = $region12
      $region11: #{tpu_custom_call.1} parent=5 // pred_region
        %s208 = ssub.s32 %s16, 1
        // Predicated region
        $region13: #{tpu_custom_call.1} parent=11 // pred_check
          %p209 = pneg %p63
        $region14: #{tpu_custom_call.1} parent=11 // pred_check_branch
          %211 = sbr.rel (%p209) target = $region16
        $region15: #{tpu_custom_call.1} parent=11 // pred_region
          _
        $region16: #{tpu_custom_call.1} parent=11 // pred_fallthru
          _
        // Predicated region
        $region17: #{tpu_custom_call.1} parent=11 // pred_check
          %p212 = pneg %p84
        $region18: #{tpu_custom_call.1} parent=11 // pred_check_branch
          %214 = sbr.rel (%p212) target = $region20
        $region19: #{tpu_custom_call.1} parent=11 // pred_region
          _
        $region20: #{tpu_custom_call.1} parent=11 // pred_fallthru
          _
        // Predicated region
        $region21: #{tpu_custom_call.1} parent=11 // pred_check
          %p215 = pneg %p105
        $region22: #{tpu_custom_call.1} parent=11 // pred_check_branch
          %217 = sbr.rel (%p215) target = $region24
        $region23: #{tpu_custom_call.1} parent=11 // pred_region
          _
        $region24: #{tpu_custom_call.1} parent=11 // pred_fallthru
          _
        // Predicated region
        $region25: #{tpu_custom_call.1} parent=11 // pred_check
          %p218 = pneg %p126
        $region26: #{tpu_custom_call.1} parent=11 // pred_check_branch
          %220 = sbr.rel (%p218) target = $region28
        $region27: #{tpu_custom_call.1} parent=11 // pred_region
          _
        $region28: #{tpu_custom_call.1} parent=11 // pred_fallthru
          _
        // Predicated region
        $region29: #{tpu_custom_call.1} parent=11 // pred_check
          %p221 = pneg %p147
        $region30: #{tpu_custom_call.1} parent=11 // pred_check_branch
          %223 = sbr.rel (%p221) target = $region32
        $region31: #{tpu_custom_call.1} parent=11 // pred_region
          _
        $region32: #{tpu_custom_call.1} parent=11 // pred_fallthru
          _
        // Predicated region
        $region33: #{tpu_custom_call.1} parent=11 // pred_check
          %p224 = pneg %p168
        $region34: #{tpu_custom_call.1} parent=11 // pred_check_branch
          %226 = sbr.rel (%p224) target = $region36
        $region35: #{tpu_custom_call.1} parent=11 // pred_region
          _
        $region36: #{tpu_custom_call.1} parent=11 // pred_fallthru
          _
      $region12: #{tpu_custom_call.1} parent=5 // pred_fallthru
        _
      %p227 = scmp.lt.s32.totalorder %s16, 2
      // Predicated region
      $region37: #{tpu_custom_call.1} parent=5 // pred_check
        %p228 = pneg %p227
      $region38: #{tpu_custom_call.1} parent=5 // pred_check_branch
        %230 = sbr.rel (%p228) target = $region40
      $region39: #{tpu_custom_call.1} parent=5 // pred_region
        // Predicated region
        $region41: #{tpu_custom_call.1} parent=39 // pred_check
          %p231 = pneg %p36
        $region42: #{tpu_custom_call.1} parent=39 // pred_check_branch
          %233 = sbr.rel (%p231) target = $region44
        $region43: #{tpu_custom_call.1} parent=39 // pred_region
          %p234 = scmp.lt.s32.totalorder %s16, 1
          %s235 = scalar_select %p234, %s16, 1
          %s236 = smul.addr %s235, 8
          %s237 = scalar_lea.vmem %s0, %s236
        $region44: #{tpu_custom_call.1} parent=39 // pred_fallthru
          _
      $region40: #{tpu_custom_call.1} parent=5 // pred_fallthru
        _
      %p238 = scmp.le.s32.totalorder 1, %s16
      %p239 = scmp.lt.s32.totalorder %s16, 3
      %p240 = pnand %p238, %p239
      %p241 = pneg %p240
      // Predicated region
      $region45: #{tpu_custom_call.1} parent=5 // pred_check
        _
      $region46: #{tpu_custom_call.1} parent=5 // pred_check_branch
        %243 = sbr.rel (%p240) target = $region48
      $region47: #{tpu_custom_call.1} parent=5 // pred_region
        %s244 = ssub.s32 %s16, 1
        %p245 = scmp.lt.s32.totalorder %s21, 1
        %s246 = scalar_select %p245, %s21, 1
        %s247 = smul.addr %s246, 8
        %s248 = scalar_lea.vmem %s0, %s247
        %p249 = pneg %p42
        %p250 = pneg %p39
        %p251 = pneg %p63
        %p252 = pneg %p60
        %p253 = pneg %p84
        %p254 = pneg %p81
        %p255 = pneg %p105
        %p256 = pneg %p102
        %p257 = pneg %p126
        %p258 = pneg %p123
        %p259 = pneg %p147
        %p260 = pneg %p144
        %p261 = pneg %p168
        %p262 = pneg %p165
        %p263 = pneg %p194
        %p264 = pneg %p191
        %s265 = sand.u32 %s181, 1
        %s266 = scalar_lea.sflag [#allocation3], %s265
        %s267 = sand.u32 %s181, 1
        %s268 = smul.addr %s267, 8
        %s269 = scalar_lea.vmem [#allocation2], %s268
        %p270 = scmp.lt.s32.totalorder %s21, 1
        %s271 = scalar_select %p270, %s21, 1
        %s272 = smul.addr %s271, 8
        %s273 = scalar_lea.vmem %s0, %s272
        %v275 = vld [vmem:[%s273] sm:$0xff]
        %v276 = vpack.c.bf16 %v275, %v275
        %v277 = vld [vmem:[%s1] sm:$0xf]
        %v278 = vld [vmem:[%s1 + $0x4] sm:$0xf]
        %v279 = vld [vmem:[%s1 + $0x8] sm:$0xf]
        %v280 = vld [vmem:[%s1 + $0xc] sm:$0xf]
        %v281 = vld [vmem:[%s2] sm:$0x1]
        %v283 = vlaneseq
        %v284 = vshrl.u32 %v283, 7
        %v285 = vsub.s32 0, %v284
        %v286 = vrot.slane %v281, %v285
        %v292 = vunpack.c.l.b16 %v277
        %v293 = vunpack.c.l.b16 %v278
        %v294 = vunpack.c.l.b16 %v279
        %v295 = vunpack.c.l.b16 %v280
        %v296 = vpack.c.b16 %v293, %v292
        %v297 = vpack.c.b16 %v295, %v294
        %vm300 = vcmask 261120
        %v302 = vsel %vm300, %v276, 0
        %304 = vmatprep.subr.bf16.mxu0 0
        %305 = vmatpush1.bf16.msra.mxu0 %v296
        %306 = vmatprep.subr.bf16.mxu0 0
        %307 = vmatpush1.bf16.msra.mxu0 %v297
        %308 = vmatprep.subr.bf16.mxu0 0
        %309 = vmatpush1.bf16.msra.mxu0 0
        %310 = vmatprep.subr.bf16.mxu0 0
        %311 = vmatpush1.bf16.msra.mxu0 0
        %312 = vmatprep.subr.bf16.mxu0 0
        %313 = vmatpush1.bf16.msra.mxu0 0
        %314 = vmatprep.subr.bf16.mxu0 0
        %315 = vmatpush1.bf16.msra.mxu0 0
        %316 = vmatprep.subr.bf16.mxu0 0
        %317 = vmatpush1.bf16.msra.mxu0 0
        %318 = vmatprep.subr.bf16.mxu0 0
        %319 = vmatpush1.bf16.msra.mxu0 0
        %320 = vmatprep.subr.bf16.mxu0 0
        %321 = vmatpush1.bf16.msra.mxu0 0
        %322 = vmatprep.subr.bf16.mxu0 0
        %323 = vmatpush1.bf16.msra.mxu0 0
        %324 = vmatprep.subr.bf16.mxu0 0
        %325 = vmatpush1.bf16.msra.mxu0 0
        %326 = vmatprep.subr.bf16.mxu0 0
        %327 = vmatpush1.bf16.msra.mxu0 0
        %328 = vmatprep.subr.bf16.mxu0 0
        %329 = vmatpush1.bf16.msra.mxu0 0
        %330 = vmatprep.subr.bf16.mxu0 0
        %331 = vmatpush1.bf16.msra.mxu0 0
        %332 = vmatprep.subr.bf16.mxu0 0
        %333 = vmatpush1.bf16.msra.mxu0 0
        %334 = vmatprep.subr.bf16.mxu0 0
        %335 = vmatpush1.bf16.msra.mxu0 0
        %336 = vmatprep.mubr.bf16.mxu0 0
        %337 = vmatmul.mubr.bf16.gmra.mrb[0].mxu0 %v302
        %v338 = vpop.f32.mrb[0].mxu0
        %v339 = vadd.f32 %v286, %v338
        %v340 = vpop.f32.mrb[0].mxu0
        %v341 = vpop.f32.mrb[0].mxu0
        %v342 = vpop.f32.mrb[0].mxu0
        %343 = vdwg.mxu0
        %v344 = vmul.f32 %v339, 0.5
        %v345 = vrcp.pop 1.4142135
        %v346 = vmul.f32 %v339, %v345
        %v347 = verf.f32.pop %v346
        %v348 = vadd.f32 %v347, 1.0
        %v349 = vmul.f32 %v344, %v348
        %v350 = vpack.c.bf16 %v349, %v349
        %v351 = vld [vmem:[%s3] sm:$0xf]
        %v352 = vld [vmem:[%s3 + $0x4] sm:$0xf]
        %v353 = vld [vmem:[%s3 + $0x8] sm:$0xf]
        %v354 = vld [vmem:[%s3 + $0xc] sm:$0xf]
        %v355 = vld [vmem:[%s3 + $0x10] sm:$0xf]
        %v356 = vld [vmem:[%s3 + $0x14] sm:$0xf]
        %v357 = vld [vmem:[%s3 + $0x18] sm:$0xf]
        %v358 = vld [vmem:[%s3 + $0x1c] sm:$0xf]
        %v359 = vld [vmem:[%s3 + $0x20] sm:$0xf]
        %v360 = vld [vmem:[%s3 + $0x24] sm:$0xf]
        %v361 = vld [vmem:[%s3 + $0x28] sm:$0xf]
        %v362 = vld [vmem:[%s3 + $0x2c] sm:$0xf]
        %v363 = vld [vmem:[%s3 + $0x30] sm:$0xf]
        %v364 = vld [vmem:[%s3 + $0x34] sm:$0xf]
        %v365 = vld [vmem:[%s3 + $0x38] sm:$0xf]
        %v366 = vld [vmem:[%s3 + $0x3c] sm:$0xf]
        %v367 = vld [vmem:[%s4] sm:$0x1]
        %v369 = vlaneseq
        %v370 = vshrl.u32 %v369, 7
        %v371 = vsub.s32 0, %v370
        %v372 = vrot.slane %v367, %v371
        %v390 = vunpack.c.l.b16 %v351
        %v391 = vunpack.c.l.b16 %v352
        %v392 = vunpack.c.l.b16 %v353
        %v393 = vunpack.c.l.b16 %v354
        %v394 = vunpack.c.l.b16 %v355
        %v395 = vunpack.c.l.b16 %v356
        %v396 = vunpack.c.l.b16 %v357
        %v397 = vunpack.c.l.b16 %v358
        %v398 = vunpack.c.l.b16 %v359
        %v399 = vunpack.c.l.b16 %v360
        %v400 = vunpack.c.l.b16 %v361
        %v401 = vunpack.c.l.b16 %v362
        %v402 = vunpack.c.l.b16 %v363
        %v403 = vunpack.c.l.b16 %v364
        %v404 = vunpack.c.l.b16 %v365
        %v405 = vunpack.c.l.b16 %v366
        %v406 = vpack.c.b16 %v391, %v390
        %v407 = vpack.c.b16 %v393, %v392
        %v408 = vpack.c.b16 %v395, %v394
        %v409 = vpack.c.b16 %v397, %v396
        %v410 = vpack.c.b16 %v399, %v398
        %v411 = vpack.c.b16 %v401, %v400
        %v412 = vpack.c.b16 %v403, %v402
        %v413 = vpack.c.b16 %v405, %v404
        %422 = vmatprep.subr.bf16.mxu0 0
        %423 = vmatpush1.bf16.msra.mxu0 %v406
        %424 = vmatprep.subr.bf16.mxu0 0
        %425 = vmatpush1.bf16.msra.mxu0 %v407
        %426 = vmatprep.subr.bf16.mxu0 0
        %427 = vmatpush1.bf16.msra.mxu0 %v408
        %428 = vmatprep.subr.bf16.mxu0 0
        %429 = vmatpush1.bf16.msra.mxu0 %v409
        %430 = vmatprep.subr.bf16.mxu0 0
        %431 = vmatpush1.bf16.msra.mxu0 %v410
        %432 = vmatprep.subr.bf16.mxu0 0
        %433 = vmatpush1.bf16.msra.mxu0 %v411
        %434 = vmatprep.subr.bf16.mxu0 0
        %435 = vmatpush1.bf16.msra.mxu0 %v412
        %436 = vmatprep.subr.bf16.mxu0 0
        %437 = vmatpush1.bf16.msra.mxu0 %v413
        %438 = vmatprep.subr.bf16.mxu0 0
        %439 = vmatpush1.bf16.msra.mxu0 0
        %440 = vmatprep.subr.bf16.mxu0 0
        %441 = vmatpush1.bf16.msra.mxu0 0
        %442 = vmatprep.subr.bf16.mxu0 0
        %443 = vmatpush1.bf16.msra.mxu0 0
        %444 = vmatprep.subr.bf16.mxu0 0
        %445 = vmatpush1.bf16.msra.mxu0 0
        %446 = vmatprep.subr.bf16.mxu0 0
        %447 = vmatpush1.bf16.msra.mxu0 0
        %448 = vmatprep.subr.bf16.mxu0 0
        %449 = vmatpush1.bf16.msra.mxu0 0
        %450 = vmatprep.subr.bf16.mxu0 0
        %451 = vmatpush1.bf16.msra.mxu0 0
        %452 = vmatprep.subr.bf16.mxu0 0
        %453 = vmatpush1.bf16.msra.mxu0 0
        %454 = vmatprep.mubr.bf16.mxu0 0
        %455 = vmatmul.mubr.bf16.gmra.mrb[0].mxu0 %v350
        %v456 = vpop.f32.mrb[0].mxu0
        %v457 = vadd.f32 %v372, %v456
        %v458 = vpop.f32.mrb[0].mxu0
        %v459 = vpop.f32.mrb[0].mxu0
        %v460 = vpop.f32.mrb[0].mxu0
        %461 = vdwg.mxu0
        %v462 = vadd.f32 %v457, %v275
        %v463 = vsel %vm300, %v462, 0.0
        %464 = vadd.xlane.f32.xlu0 %v463
        %v465 = vpop.xlane.xlu0 %464
        %v466 = vrcp.pop 32.0
        %v467 = vmul.f32 %v465, %v466
        %v468 = vsub.f32 %v462, %v467
        %v469 = vmul.f32 %v468, %v468
        %v470 = vsel %vm300, %v469, 0.0
        %471 = vadd.xlane.f32.xlu0 %v470
        %v472 = vpop.xlane.xlu0 %471
        %v473 = vmul.f32 %v472, %v466
        %v474 = vadd.f32 %v473, 1e-05
        %v475 = vrsqrt.pop %v474
        %v476 = vmul.f32 %v468, %v475
        %v477 = vld [vmem:[%s5] sm:$0x1]
        %v479 = vlaneseq
        %v480 = vshrl.u32 %v479, 7
        %v481 = vsub.s32 0, %v480
        %v482 = vrot.slane %v477, %v481
        %v484 = vmul.f32 %v482, %v476
        %v485 = vld [vmem:[%s6] sm:$0x1]
        %v487 = vlaneseq
        %v488 = vshrl.u32 %v487, 7
        %v489 = vsub.s32 0, %v488
        %v490 = vrot.slane %v485, %v489
        %v492 = vadd.f32 %v484, %v490
        %493 = vst.msk [vmem:[%s269] sm:$0xff] %vm300, %v492
        %s494 = sand.u32 %s181, 1
        %s495 = scalar_lea.sflag [#allocation3], %s494
        %s496 = sand.u32 %s181, 1
        %s497 = smul.addr %s496, 8
        %s498 = scalar_lea.vmem [#allocation2], %s497
        // Predicated region
        $region49: #{tpu_custom_call.1} parent=47 // pred_check
          %p499 = pneg %p191
        $region50: #{tpu_custom_call.1} parent=47 // pred_check_branch
          %501 = sbr.rel (%p499) target = $region52
        $region51: #{tpu_custom_call.1} parent=47 // pred_region
          %s503 = ssub.s32 128, 128
          %504 = vsyncadd %s495, %s503
          %s505 = smul.addr %s21, 128
          %s506 = scalar_lea.hbm %s7, %s505
          %s508 = sshll.u32 %s498, 4
          %s509 = int_to_ptr.vmem [resolvable:$true] %s508
          %511 = dma.vmem_to_hbm [thread:$0]  %s509, 128, %s506, %s495
        $region52: #{tpu_custom_call.1} parent=47 // pred_fallthru
          _
      $region48: #{tpu_custom_call.1} parent=5 // pred_fallthru
        _
      %p512 = scmp.le.s32.totalorder 2, %s16
      // Predicated region
      $region53: #{tpu_custom_call.1} parent=5 // pred_check
        %p513 = pneg %p512
      $region54: #{tpu_custom_call.1} parent=5 // pred_check_branch
        %515 = sbr.rel (%p513) target = $region56
      $region55: #{tpu_custom_call.1} parent=5 // pred_region
        %s516 = ssub.s32 %s16, 2
        // Predicated region
        $region57: #{tpu_custom_call.1} parent=55 // pred_check
          %p517 = pneg %p197
        $region58: #{tpu_custom_call.1} parent=55 // pred_check_branch
          %519 = sbr.rel (%p517) target = $region60
        $region59: #{tpu_custom_call.1} parent=55 // pred_region
          %s520 = sand.u32 %s182, 1
          %s521 = scalar_lea.sflag [#allocation3], %s520
          %s522 = sand.u32 %s182, 1
          %s523 = smul.addr %s522, 8
          %s524 = scalar_lea.vmem [#allocation2], %s523
          %525 = dma.done %s521, 128
        $region60: #{tpu_custom_call.1} parent=55 // pred_fallthru
          _
      $region56: #{tpu_custom_call.1} parent=5 // pred_fallthru
        _
    $region6: #{tpu_custom_call.1} parent=1 // loop_footer
      %s20 = sadd.s32 1, %s16
    $region7: #{tpu_custom_call.1} parent=1 // loop_footer_branch
      %15 = sbr.rel target = $region3
    $region8: #{tpu_custom_call.1} parent=1 // loop_exit
      _
    %526 = vsyncpa [#allocation3], 1
    %s527 = scalar_lea.sflag [#allocation3], 1
    %528 = vsyncpa %s527, 1

// kernel: tpu_custom_call.1
$region0: #{tpu_custom_call.1}
  #allocation0 [shape = 'u32[]', space=smem, size = 0x4, offset = 0x4, fixed_abs, tag = 'smem constant byte address 0x4 - core index']
  #allocation1 [shape = 'u32[144,128]{1,0:T(1,128)}', space=vmem, size = 0x12000, scoped, tag = 'internal scratch']
  %s0 = inlined_call_operand.vmem [shape: f32[16,32], index: 0, kind: input, shape index: {}]
  %s1 = inlined_call_operand.vmem [shape: bf16[32,128], index: 1, kind: input, shape index: {}]
  %s2 = inlined_call_operand.vmem [shape: f32[1,128], index: 2, kind: input, shape index: {}]
  %s3 = inlined_call_operand.vmem [shape: bf16[128,32], index: 3, kind: input, shape index: {}]
  %s4 = inlined_call_operand.vmem [shape: f32[1,32], index: 4, kind: input, shape index: {}]
  %s5 = inlined_call_operand.vmem [shape: f32[1,32], index: 5, kind: input, shape index: {}]
  %s6 = inlined_call_operand.vmem [shape: f32[1,32], index: 6, kind: input, shape index: {}]
  %s7 = inlined_call_operand.hbm [shape: f32[16,32], index: 7, kind: output, shape index: {}]
  %s8 = sld [smem:[#allocation0]]
  $region61: #{tpu_custom_call.1} parent=0
    _
  %s10 = ssub.s32 1, %s8
  %s11 = scalar_select 0, %s10, %s8
  $region1: #{tpu_custom_call.1} parent=0
    #allocation2 [shape = 'u8[8192]{0}', space=vmem, size = 0x2000, scoped, tag = 'output window, operand 0']
    #allocation3 [shape = 's32[2]{0}', space=sflag, size = 0x8, scoped, tag = 'scoped memory for tpu_custom_call.1']
    %12 = vsyncpa [#allocation3], 0
    %s13 = scalar_lea.sflag [#allocation3], 1
    %14 = vsyncpa %s13, 0
    loop: start=0, step=1, limit=4
    $region2: #{tpu_custom_call.1} parent=1 // loop_pre_header
      _
    $region3: #{tpu_custom_call.1} parent=1 // loop_header
      %s16 = sphi 0, %s20
      %p17 = scmp.ge.s32.totalorder %s16, 4
      %s26 = sphi 0, %s28
      %s29 = sphi 0, %s26
      %s30 = sphi 0, %s29
      %s46 = sphi 0, %s30
      %s50 = sphi 0, %s50
      %s52 = sphi 0, %s50
      %s53 = sphi 0, %s52
      %s67 = sphi 0, %s53
      %s71 = sphi 0, %s71
      %s73 = sphi 0, %s71
      %s74 = sphi 0, %s73
      %s88 = sphi 0, %s74
      %s92 = sphi 0, %s92
      %s94 = sphi 0, %s92
      %s95 = sphi 0, %s94
      %s109 = sphi 0, %s95
      %s113 = sphi 0, %s113
      %s115 = sphi 0, %s113
      %s116 = sphi 0, %s115
      %s130 = sphi 0, %s116
      %s134 = sphi 0, %s134
      %s136 = sphi 0, %s134
      %s137 = sphi 0, %s136
      %s151 = sphi 0, %s137
      %s155 = sphi 0, %s155
      %s157 = sphi 0, %s155
      %s158 = sphi 0, %s157
      %s172 = sphi 0, %s158
      %s178 = sphi 0, %s180
      %s181 = sphi 0, %s178
      %s182 = sphi 0, %s181
      %s198 = sphi 0, %s182
    $region4: #{tpu_custom_call.1} parent=1 // loop_header_branch
      %19 = sbr.rel (%p17) target = $region8
    $region5: #{tpu_custom_call.1} parent=1 // loop_body
      %s21 = ssub.s32 %s16, 1
      %s22 = ssub.s32 %s16, 2
      %s23 = sadd.s32 %s16, 1
      %s24 = ssub.s32 %s16, %s23
      %p25 = scmp.eq.s32.totalorder %s24, 0
      %s27 = sadd.s32 %s26, 1
      %s28 = scalar_select %p25, %s26, %s27
      %p31 = pneg %p25
      %p32 = scmp.eq.s32.totalorder %s16, 1
      %p33 = por %p31, %p32
      %p34 = scmp.ne.s32.totalorder %s26, %s29
      %p35 = scmp.eq.s32.totalorder %s16, 0
      %p36 = por %p34, %p35
      %p37 = scmp.ne.s32.totalorder %s26, %s29
      %p38 = scmp.eq.s32.totalorder %s21, 1
      %p39 = por %p37, %p38
      %p40 = scmp.ne.s32.totalorder %s29, %s30
      %p41 = scmp.eq.s32.totalorder %s21, 0
      %p42 = por %p40, %p41
      %p43 = scmp.ne.s32.totalorder %s29, %s30
      %p44 = scmp.eq.s32.totalorder %s22, 1
      %p45 = por %p43, %p44
      %p47 = scmp.ne.s32.totalorder %s30, %s46
      %p48 = scmp.eq.s32.totalorder %s22, 0
      %p49 = por %p47, %p48
      %s51 = sadd.s32 %s50, 1
      %p54 = scmp.eq.s32.totalorder %s16, 1
      %p55 = scmp.ne.s32.totalorder %s50, %s52
      %p56 = scmp.eq.s32.totalorder %s16, 0
      %p57 = por %p55, %p56
      %p58 = scmp.ne.s32.totalorder %s50, %s52
      %p59 = scmp.eq.s32.totalorder %s21, 1
      %p60 = por %p58, %p59
      %p61 = scmp.ne.s32.totalorder %s52, %s53
      %p62 = scmp.eq.s32.totalorder %s21, 0
      %p63 = por %p61, %p62
      %p64 = scmp.ne.s32.totalorder %s52, %s53
      %p65 = scmp.eq.s32.totalorder %s22, 1
      %p66 = por %p64, %p65
      %p68 = scmp.ne.s32.totalorder %s53, %s67
      %p69 = scmp.eq.s32.totalorder %s22, 0
      %p70 = por %p68, %p69
      %s72 = sadd.s32 %s71, 1
      %p75 = scmp.eq.s32.totalorder %s16, 1
      %p76 = scmp.ne.s32.totalorder %s71, %s73
      %p77 = scmp.eq.s32.totalorder %s16, 0
      %p78 = por %p76, %p77
      %p79 = scmp.ne.s32.totalorder %s71, %s73
      %p80 = scmp.eq.s32.totalorder %s21, 1
      %p81 = por %p79, %p80
      %p82 = scmp.ne.s32.totalorder %s73, %s74
      %p83 = scmp.eq.s32.totalorder %s21, 0
      %p84 = por %p82, %p83
      %p85 = scmp.ne.s32.totalorder %s73, %s74
      %p86 = scmp.eq.s32.totalorder %s22, 1
      %p87 = por %p85, %p86
      %p89 = scmp.ne.s32.totalorder %s74, %s88
      %p90 = scmp.eq.s32.totalorder %s22, 0
      %p91 = por %p89, %p90
      %s93 = sadd.s32 %s92, 1
      %p96 = scmp.eq.s32.totalorder %s16, 1
      %p97 = scmp.ne.s32.totalorder %s92, %s94
      %p98 = scmp.eq.s32.totalorder %s16, 0
      %p99 = por %p97, %p98
      %p100 = scmp.ne.s32.totalorder %s92, %s94
      %p101 = scmp.eq.s32.totalorder %s21, 1
      %p102 = por %p100, %p101
      %p103 = scmp.ne.s32.totalorder %s94, %s95
      %p104 = scmp.eq.s32.totalorder %s21, 0
      %p105 = por %p103, %p104
      %p106 = scmp.ne.s32.totalorder %s94, %s95
      %p107 = scmp.eq.s32.totalorder %s22, 1
      %p108 = por %p106, %p107
      %p110 = scmp.ne.s32.totalorder %s95, %s109
      %p111 = scmp.eq.s32.totalorder %s22, 0
      %p112 = por %p110, %p111
      %s114 = sadd.s32 %s113, 1
      %p117 = scmp.eq.s32.totalorder %s16, 1
      %p118 = scmp.ne.s32.totalorder %s113, %s115
      %p119 = scmp.eq.s32.totalorder %s16, 0
      %p120 = por %p118, %p119
      %p121 = scmp.ne.s32.totalorder %s113, %s115
      %p122 = scmp.eq.s32.totalorder %s21, 1
      %p123 = por %p121, %p122
      %p124 = scmp.ne.s32.totalorder %s115, %s116
      %p125 = scmp.eq.s32.totalorder %s21, 0
      %p126 = por %p124, %p125
      %p127 = scmp.ne.s32.totalorder %s115, %s116
      %p128 = scmp.eq.s32.totalorder %s22, 1
      %p129 = por %p127, %p128
      %p131 = scmp.ne.s32.totalorder %s116, %s130
      %p132 = scmp.eq.s32.totalorder %s22, 0
      %p133 = por %p131, %p132
      %s135 = sadd.s32 %s134, 1
      %p138 = scmp.eq.s32.totalorder %s16, 1
      %p139 = scmp.ne.s32.totalorder %s134, %s136
      %p140 = scmp.eq.s32.totalorder %s16, 0
      %p141 = por %p139, %p140
      %p142 = scmp.ne.s32.totalorder %s134, %s136
      %p143 = scmp.eq.s32.totalorder %s21, 1
      %p144 = por %p142, %p143
      %p145 = scmp.ne.s32.totalorder %s136, %s137
      %p146 = scmp.eq.s32.totalorder %s21, 0
      %p147 = por %p145, %p146
      %p148 = scmp.ne.s32.totalorder %s136, %s137
      %p149 = scmp.eq.s32.totalorder %s22, 1
      %p150 = por %p148, %p149
      %p152 = scmp.ne.s32.totalorder %s137, %s151
      %p153 = scmp.eq.s32.totalorder %s22, 0
      %p154 = por %p152, %p153
      %s156 = sadd.s32 %s155, 1
      %p159 = scmp.eq.s32.totalorder %s16, 1
      %p160 = scmp.ne.s32.totalorder %s155, %s157
      %p161 = scmp.eq.s32.totalorder %s16, 0
      %p162 = por %p160, %p161
      %p163 = scmp.ne.s32.totalorder %s155, %s157
      %p164 = scmp.eq.s32.totalorder %s21, 1
      %p165 = por %p163, %p164
      %p166 = scmp.ne.s32.totalorder %s157, %s158
      %p167 = scmp.eq.s32.totalorder %s21, 0
      %p168 = por %p166, %p167
      %p169 = scmp.ne.s32.totalorder %s157, %s158
      %p170 = scmp.eq.s32.totalorder %s22, 1
      %p171 = por %p169, %p170
      %p173 = scmp.ne.s32.totalorder %s158, %s172
      %p174 = scmp.eq.s32.totalorder %s22, 0
      %p175 = por %p173, %p174
      %s176 = ssub.s32 %s16, %s23
      %p177 = scmp.eq.s32.totalorder %s176, 0
      %s179 = sadd.s32 %s178, 1
      %s180 = scalar_select %p177, %s178, %s179
      %p183 = pneg %p177
      %p184 = scmp.eq.s32.totalorder %s16, 1
      %p185 = por %p183, %p184
      %p186 = scmp.ne.s32.totalorder %s178, %s181
      %p187 = scmp.eq.s32.totalorder %s16, 0
      %p188 = por %p186, %p187
      %p189 = scmp.ne.s32.totalorder %s178, %s181
      %p190 = scmp.eq.s32.totalorder %s21, 1
      %p191 = por %p189, %p190
      %p192 = scmp.ne.s32.totalorder %s181, %s182
      %p193 = scmp.eq.s32.totalorder %s21, 0
      %p194 = por %p192, %p193
      %p195 = scmp.ne.s32.totalorder %s181, %s182
      %p196 = scmp.eq.s32.totalorder %s22, 1
      %p197 = por %p195, %p196
      %p199 = scmp.ne.s32.totalorder %s182, %s198
      %p200 = scmp.eq.s32.totalorder %s22, 0
      %p201 = por %p199, %p200
      %p202 = scmp.le.s32.totalorder 1, %s16
      %p203 = scmp.lt.s32.totalorder %s16, 3
      %p204 = pnand %p202, %p203
      %p205 = pneg %p204
      // Predicated region
      $region9: #{tpu_custom_call.1} parent=5 // pred_check
        _
      $region10: #{tpu_custom_call.1} parent=5 // pred_check_branch
        %207 = sbr.rel (%p204) target = $region12
      $region11: #{tpu_custom_call.1} parent=5 // pred_region
        %s208 = ssub.s32 %s16, 1
        // Predicated region
        $region13: #{tpu_custom_call.1} parent=11 // pred_check
          %p209 = pneg %p63
        $region14: #{tpu_custom_call.1} parent=11 // pred_check_branch
          %211 = sbr.rel (%p209) target = $region16
        $region15: #{tpu_custom_call.1} parent=11 // pred_region
          _
        $region16: #{tpu_custom_call.1} parent=11 // pred_fallthru
          _
        // Predicated region
        $region17: #{tpu_custom_call.1} parent=11 // pred_check
          %p212 = pneg %p84
        $region18: #{tpu_custom_call.1} parent=11 // pred_check_branch
          %214 = sbr.rel (%p212) target = $region20
        $region19: #{tpu_custom_call.1} parent=11 // pred_region
          _
        $region20: #{tpu_custom_call.1} parent=11 // pred_fallthru
          _
        // Predicated region
        $region21: #{tpu_custom_call.1} parent=11 // pred_check
          %p215 = pneg %p105
        $region22: #{tpu_custom_call.1} parent=11 // pred_check_branch
          %217 = sbr.rel (%p215) target = $region24
        $region23: #{tpu_custom_call.1} parent=11 // pred_region
          _
        $region24: #{tpu_custom_call.1} parent=11 // pred_fallthru
          _
        // Predicated region
        $region25: #{tpu_custom_call.1} parent=11 // pred_check
          %p218 = pneg %p126
        $region26: #{tpu_custom_call.1} parent=11 // pred_check_branch
          %220 = sbr.rel (%p218) target = $region28
        $region27: #{tpu_custom_call.1} parent=11 // pred_region
          _
        $region28: #{tpu_custom_call.1} parent=11 // pred_fallthru
          _
        // Predicated region
        $region29: #{tpu_custom_call.1} parent=11 // pred_check
          %p221 = pneg %p147
        $region30: #{tpu_custom_call.1} parent=11 // pred_check_branch
          %223 = sbr.rel (%p221) target = $region32
        $region31: #{tpu_custom_call.1} parent=11 // pred_region
          _
        $region32: #{tpu_custom_call.1} parent=11 // pred_fallthru
          _
        // Predicated region
        $region33: #{tpu_custom_call.1} parent=11 // pred_check
          %p224 = pneg %p168
        $region34: #{tpu_custom_call.1} parent=11 // pred_check_branch
          %226 = sbr.rel (%p224) target = $region36
        $region35: #{tpu_custom_call.1} parent=11 // pred_region
          _
        $region36: #{tpu_custom_call.1} parent=11 // pred_fallthru
          _
      $region12: #{tpu_custom_call.1} parent=5 // pred_fallthru
        _
      %p227 = scmp.lt.s32.totalorder %s16, 2
      // Predicated region
      $region37: #{tpu_custom_call.1} parent=5 // pred_check
        %p228 = pneg %p227
      $region38: #{tpu_custom_call.1} parent=5 // pred_check_branch
        %230 = sbr.rel (%p228) target = $region40
      $region39: #{tpu_custom_call.1} parent=5 // pred_region
        // Predicated region
        $region41: #{tpu_custom_call.1} parent=39 // pred_check
          %p231 = pneg %p36
        $region42: #{tpu_custom_call.1} parent=39 // pred_check_branch
          %233 = sbr.rel (%p231) target = $region44
        $region43: #{tpu_custom_call.1} parent=39 // pred_region
          %p234 = scmp.lt.s32.totalorder %s16, 1
          %s235 = scalar_select %p234, %s16, 1
          %s236 = smul.addr %s235, 8
          %s237 = scalar_lea.vmem %s0, %s236
        $region44: #{tpu_custom_call.1} parent=39 // pred_fallthru
          _
      $region40: #{tpu_custom_call.1} parent=5 // pred_fallthru
        _
      %p238 = scmp.le.s32.totalorder 1, %s16
      %p239 = scmp.lt.s32.totalorder %s16, 3
      %p240 = pnand %p238, %p239
      %p241 = pneg %p240
      // Predicated region
      $region45: #{tpu_custom_call.1} parent=5 // pred_check
        _
      $region46: #{tpu_custom_call.1} parent=5 // pred_check_branch
        %243 = sbr.rel (%p240) target = $region48
      $region47: #{tpu_custom_call.1} parent=5 // pred_region
        %s244 = ssub.s32 %s16, 1
        %p245 = scmp.lt.s32.totalorder %s21, 1
        %s246 = scalar_select %p245, %s21, 1
        %s247 = smul.addr %s246, 8
        %s248 = scalar_lea.vmem %s0, %s247
        %p249 = pneg %p42
        %p250 = pneg %p39
        %p251 = pneg %p63
        %p252 = pneg %p60
        %p253 = pneg %p84
        %p254 = pneg %p81
        %p255 = pneg %p105
        %p256 = pneg %p102
        %p257 = pneg %p126
        %p258 = pneg %p123
        %p259 = pneg %p147
        %p260 = pneg %p144
        %p261 = pneg %p168
        %p262 = pneg %p165
        %p263 = pneg %p194
        %p264 = pneg %p191
        %s265 = sand.u32 %s181, 1
        %s266 = scalar_lea.sflag [#allocation3], %s265
        %s267 = sand.u32 %s181, 1
        %s268 = smul.addr %s267, 8
        %s269 = scalar_lea.vmem [#allocation2], %s268
        %p270 = scmp.lt.s32.totalorder %s21, 1
        %s271 = scalar_select %p270, %s21, 1
        %s272 = smul.addr %s271, 8
        %s273 = scalar_lea.vmem %s0, %s272
        %v275 = vld [vmem:[%s273] sm:$0xff]
        %v276 = vpack.c.bf16 %v275, %v275
        %v277 = vld [vmem:[%s1] sm:$0xf]
        %v278 = vld [vmem:[%s1 + $0x4] sm:$0xf]
        %v279 = vld [vmem:[%s1 + $0x8] sm:$0xf]
        %v280 = vld [vmem:[%s1 + $0xc] sm:$0xf]
        %v281 = vld [vmem:[%s2] sm:$0x1]
        %v283 = vlaneseq
        %v284 = vshrl.u32 %v283, 7
        %v285 = vsub.s32 0, %v284
        %v286 = vrot.slane %v281, %v285
        %v292 = vunpack.c.l.b16 %v277
        %v293 = vunpack.c.l.b16 %v278
        %v294 = vunpack.c.l.b16 %v279
        %v295 = vunpack.c.l.b16 %v280
        %v296 = vpack.c.b16 %v293, %v292
        %v297 = vpack.c.b16 %v295, %v294
        %vm300 = vcmask 261120
        %v302 = vsel %vm300, %v276, 0
        %304 = vmatprep.subr.bf16.mxu0 0
        %305 = vmatpush1.bf16.msra.mxu0 %v296
        %306 = vmatprep.subr.bf16.mxu0 0
        %307 = vmatpush1.bf16.msra.mxu0 %v297
        %308 = vmatprep.subr.bf16.mxu0 0
        %309 = vmatpush1.bf16.msra.mxu0 0
        %310 = vmatprep.subr.bf16.mxu0 0
        %311 = vmatpush1.bf16.msra.mxu0 0
        %312 = vmatprep.subr.bf16.mxu0 0
        %313 = vmatpush1.bf16.msra.mxu0 0
        %314 = vmatprep.subr.bf16.mxu0 0
        %315 = vmatpush1.bf16.msra.mxu0 0
        %316 = vmatprep.subr.bf16.mxu0 0
        %317 = vmatpush1.bf16.msra.mxu0 0
        %318 = vmatprep.subr.bf16.mxu0 0
        %319 = vmatpush1.bf16.msra.mxu0 0
        %320 = vmatprep.subr.bf16.mxu0 0
        %321 = vmatpush1.bf16.msra.mxu0 0
        %322 = vmatprep.subr.bf16.mxu0 0
        %323 = vmatpush1.bf16.msra.mxu0 0
        %324 = vmatprep.subr.bf16.mxu0 0
        %325 = vmatpush1.bf16.msra.mxu0 0
        %326 = vmatprep.subr.bf16.mxu0 0
        %327 = vmatpush1.bf16.msra.mxu0 0
        %328 = vmatprep.subr.bf16.mxu0 0
        %329 = vmatpush1.bf16.msra.mxu0 0
        %330 = vmatprep.subr.bf16.mxu0 0
        %331 = vmatpush1.bf16.msra.mxu0 0
        %332 = vmatprep.subr.bf16.mxu0 0
        %333 = vmatpush1.bf16.msra.mxu0 0
        %334 = vmatprep.subr.bf16.mxu0 0
        %335 = vmatpush1.bf16.msra.mxu0 0
        %336 = vmatprep.mubr.bf16.mxu0 0
        %337 = vmatmul.mubr.bf16.gmra.mrb[0].mxu0 %v302
        %v338 = vpop.f32.mrb[0].mxu0
        %v339 = vadd.f32 %v286, %v338
        %v340 = vpop.f32.mrb[0].mxu0
        %v341 = vpop.f32.mrb[0].mxu0
        %v342 = vpop.f32.mrb[0].mxu0
        %343 = vdwg.mxu0
        %v344 = vmul.f32 %v339, 0.5
        %v345 = vrcp.pop 1.4142135
        %v346 = vmul.f32 %v339, %v345
        %v347 = verf.f32.pop %v346
        %v348 = vadd.f32 %v347, 1.0
        %v349 = vmul.f32 %v344, %v348
        %v350 = vpack.c.bf16 %v349, %v349
        %v351 = vld [vmem:[%s3] sm:$0xf]
        %v352 = vld [vmem:[%s3 + $0x4] sm:$0xf]
        %v353 = vld [vmem:[%s3 + $0x8] sm:$0xf]
        %v354 = vld [vmem:[%s3 + $0xc] sm:$0xf]
        %v355 = vld [vmem:[%s3 + $0x10] sm:$0xf]
        %v356 = vld [vmem:[%s3 + $0x14] sm:$0xf]
        %v357 = vld [vmem:[%s3 + $0x18] sm:$0xf]
        %v358 = vld [vmem:[%s3 + $0x1c] sm:$0xf]
        %v359 = vld [vmem:[%s3 + $0x20] sm:$0xf]
        %v360 = vld [vmem:[%s3 + $0x24] sm:$0xf]
        %v361 = vld [vmem:[%s3 + $0x28] sm:$0xf]
        %v362 = vld [vmem:[%s3 + $0x2c] sm:$0xf]
        %v363 = vld [vmem:[%s3 + $0x30] sm:$0xf]
        %v364 = vld [vmem:[%s3 + $0x34] sm:$0xf]
        %v365 = vld [vmem:[%s3 + $0x38] sm:$0xf]
        %v366 = vld [vmem:[%s3 + $0x3c] sm:$0xf]
        %v367 = vld [vmem:[%s4] sm:$0x1]
        %v369 = vlaneseq
        %v370 = vshrl.u32 %v369, 7
        %v371 = vsub.s32 0, %v370
        %v372 = vrot.slane %v367, %v371
        %v390 = vunpack.c.l.b16 %v351
        %v391 = vunpack.c.l.b16 %v352
        %v392 = vunpack.c.l.b16 %v353
        %v393 = vunpack.c.l.b16 %v354
        %v394 = vunpack.c.l.b16 %v355
        %v395 = vunpack.c.l.b16 %v356
        %v396 = vunpack.c.l.b16 %v357
        %v397 = vunpack.c.l.b16 %v358
        %v398 = vunpack.c.l.b16 %v359
        %v399 = vunpack.c.l.b16 %v360
        %v400 = vunpack.c.l.b16 %v361
        %v401 = vunpack.c.l.b16 %v362
        %v402 = vunpack.c.l.b16 %v363
        %v403 = vunpack.c.l.b16 %v364
        %v404 = vunpack.c.l.b16 %v365
        %v405 = vunpack.c.l.b16 %v366
        %v406 = vpack.c.b16 %v391, %v390
        %v407 = vpack.c.b16 %v393, %v392
        %v408 = vpack.c.b16 %v395, %v394
        %v409 = vpack.c.b16 %v397, %v396
        %v410 = vpack.c.b16 %v399, %v398
        %v411 = vpack.c.b16 %v401, %v400
        %v412 = vpack.c.b16 %v403, %v402
        %v413 = vpack.c.b16 %v405, %v404
        %422 = vmatprep.subr.bf16.mxu0 0
        %423 = vmatpush1.bf16.msra.mxu0 %v406
        %424 = vmatprep.subr.bf16.mxu0 0
        %425 = vmatpush1.bf16.msra.mxu0 %v407
        %426 = vmatprep.subr.bf16.mxu0 0
        %427 = vmatpush1.bf16.msra.mxu0 %v408
        %428 = vmatprep.subr.bf16.mxu0 0
        %429 = vmatpush1.bf16.msra.mxu0 %v409
        %430 = vmatprep.subr.bf16.mxu0 0
        %431 = vmatpush1.bf16.msra.mxu0 %v410
        %432 = vmatprep.subr.bf16.mxu0 0
        %433 = vmatpush1.bf16.msra.mxu0 %v411
        %434 = vmatprep.subr.bf16.mxu0 0
        %435 = vmatpush1.bf16.msra.mxu0 %v412
        %436 = vmatprep.subr.bf16.mxu0 0
        %437 = vmatpush1.bf16.msra.mxu0 %v413
        %438 = vmatprep.subr.bf16.mxu0 0
        %439 = vmatpush1.bf16.msra.mxu0 0
        %440 = vmatprep.subr.bf16.mxu0 0
        %441 = vmatpush1.bf16.msra.mxu0 0
        %442 = vmatprep.subr.bf16.mxu0 0
        %443 = vmatpush1.bf16.msra.mxu0 0
        %444 = vmatprep.subr.bf16.mxu0 0
        %445 = vmatpush1.bf16.msra.mxu0 0
        %446 = vmatprep.subr.bf16.mxu0 0
        %447 = vmatpush1.bf16.msra.mxu0 0
        %448 = vmatprep.subr.bf16.mxu0 0
        %449 = vmatpush1.bf16.msra.mxu0 0
        %450 = vmatprep.subr.bf16.mxu0 0
        %451 = vmatpush1.bf16.msra.mxu0 0
        %452 = vmatprep.subr.bf16.mxu0 0
        %453 = vmatpush1.bf16.msra.mxu0 0
        %454 = vmatprep.mubr.bf16.mxu0 0
        %455 = vmatmul.mubr.bf16.gmra.mrb[0].mxu0 %v350
        %v456 = vpop.f32.mrb[0].mxu0
        %v457 = vadd.f32 %v372, %v456
        %v458 = vpop.f32.mrb[0].mxu0
        %v459 = vpop.f32.mrb[0].mxu0
        %v460 = vpop.f32.mrb[0].mxu0
        %461 = vdwg.mxu0
        %v462 = vadd.f32 %v457, %v275
        %v463 = vsel %vm300, %v462, 0.0
        %464 = vadd.xlane.f32.xlu0 %v463
        %v465 = vpop.xlane.xlu0 %464
        %v466 = vrcp.pop 32.0
        %v467 = vmul.f32 %v465, %v466
        %v468 = vsub.f32 %v462, %v467
        %v469 = vmul.f32 %v468, %v468
        %v470 = vsel %vm300, %v469, 0.0
        %471 = vadd.xlane.f32.xlu0 %v470
        %v472 = vpop.xlane.xlu0 %471
        %v473 = vmul.f32 %v472, %v466
        %v474 = vadd.f32 %v473, 1e-05
        %v475 = vrsqrt.pop %v474
        %v476 = vmul.f32 %v468, %v475
        %v477 = vld [vmem:[%s5] sm:$0x1]
        %v479 = vlaneseq
        %v480 = vshrl.u32 %v479, 7
        %v481 = vsub.s32 0, %v480
        %v482 = vrot.slane %v477, %v481
        %v484 = vmul.f32 %v482, %v476
        %v485 = vld [vmem:[%s6] sm:$0x1]
        %v487 = vlaneseq
        %v488 = vshrl.u32 %v487, 7
        %v489 = vsub.s32 0, %v488
        %v490 = vrot.slane %v485, %v489
        %v492 = vadd.f32 %v484, %v490
        %493 = vst.msk [vmem:[%s269] sm:$0xff] %vm300, %v492
        %s494 = sand.u32 %s181, 1
        %s495 = scalar_lea.sflag [#allocation3], %s494
        %s496 = sand.u32 %s181, 1
        %s497 = smul.addr %s496, 8
        %s498 = scalar_lea.vmem [#allocation2], %s497
        // Predicated region
        $region49: #{tpu_custom_call.1} parent=47 // pred_check
          %p499 = pneg %p191
        $region50: #{tpu_custom_call.1} parent=47 // pred_check_branch
          %501 = sbr.rel (%p499) target = $region52
        $region51: #{tpu_custom_call.1} parent=47 // pred_region
          %s503 = ssub.s32 128, 128
          %504 = vsyncadd %s495, %s503
          %s505 = smul.addr %s21, 128
          %s506 = scalar_lea.hbm %s7, %s505
          %s508 = sshll.u32 %s498, 4
          %s509 = int_to_ptr.vmem [resolvable:$true] %s508
          %511 = dma.vmem_to_hbm [thread:$0]  %s509, 128, %s506, %s495
        $region52: #{tpu_custom_call.1} parent=47 // pred_fallthru
          _
      $region48: #{tpu_custom_call.1} parent=5 // pred_fallthru
        _
      %p512 = scmp.le.s32.totalorder 2, %s16
      // Predicated region
      $region53: #{tpu_custom_call.1} parent=5 // pred_check
        %p513 = pneg %p512
      $region54: #{tpu_custom_call.1} parent=5 // pred_check_branch
        %515 = sbr.rel (%p513) target = $region56
      $region55: #{tpu_custom_call.1} parent=5 // pred_region
        %s516 = ssub.s32 %s16, 2
        // Predicated region
        $region57: #{tpu_custom_call.1} parent=55 // pred_check
          %p517 = pneg %p197
        $region58: #{tpu_custom_call.1} parent=55 // pred_check_branch
          %519 = sbr.rel (%p517) target = $region60
        $region59: #{tpu_custom_call.1} parent=55 // pred_region
          %s520 = sand.u32 %s182, 1
          %s521 = scalar_lea.sflag [#allocation3], %s520
          %s522 = sand.u32 %s182, 1
          %s523 = smul.addr %s522, 8
          %s524 = scalar_lea.vmem [#allocation2], %s523
          %525 = dma.done %s521, 128
        $region60: #{tpu_custom_call.1} parent=55 // pred_fallthru
          _
      $region56: #{tpu_custom_call.1} parent=5 // pred_fallthru
        _
    $region6: #{tpu_custom_call.1} parent=1 // loop_footer
      %s20 = sadd.s32 1, %s16
    $region7: #{tpu_custom_call.1} parent=1 // loop_footer_branch
      %15 = sbr.rel target = $region3
    $region8: #{tpu_custom_call.1} parent=1 // loop_exit
      _
    %526 = vsyncpa [#allocation3], 1
    %s527 = scalar_lea.sflag [#allocation3], 1
    %528 = vsyncpa %s527, 1

</llo_original>
